<compile_context>
chip_gen: v7x
topology: tpu7x:2x2x1
jax: 0.10.0
libtpu: 0.0.40
codegen_flags: <defaults>
</compile_context>

<pallas_src>
import functools

import jax
import jax.numpy as jnp
from jax import lax
from jax.experimental import pallas as pl
from jax.experimental.pallas import tpu as pltpu

_EPS = 1e-6


def _vmem_capacity_bytes():
    try:
        return int(pltpu.get_tpu_info().vmem_capacity_bytes)
    except Exception:
        return 64 * 1024 * 1024  # conservative: v7x per-TC VMEM


# ---------------------- single-pass kernel (common case) ----------------------
def _minmax_rows_kernel(x_ref, o_ref):
    # x_ref/o_ref: (ROWS, H*W) — each row is one (n, c) spatial plane.
    xf = x_ref[...].astype(jnp.float32)
    mn = jnp.min(xf, axis=-1, keepdims=True)
    mx = jnp.max(xf, axis=-1, keepdims=True)
    inv = pl.reciprocal(mx - mn + _EPS, approx=False)  # one EUP recip per row
    o_ref[...] = ((xf - mn) * inv).astype(o_ref.dtype)


# ------------- two-pass fallback (planes too large for one block) -------------
def _row_stats_kernel(x_ref, mn_ref, mx_ref, *, total_cols):
    j = pl.program_id(1)

    @pl.when(j == 0)
    def _():
        mn_ref[...] = jnp.full(mn_ref.shape, jnp.inf, dtype=mn_ref.dtype)
        mx_ref[...] = jnp.full(mx_ref.shape, -jnp.inf, dtype=mx_ref.dtype)

    xf = x_ref[...].astype(jnp.float32)
    cw = xf.shape[-1]
    cols = j * cw + lax.broadcasted_iota(jnp.int32, xf.shape, 1)
    valid = cols < total_cols  # mask unspecified padding of partial chunks
    mn_ref[...] = jnp.minimum(
        mn_ref[...],
        jnp.min(jnp.where(valid, xf, jnp.inf), axis=-1, keepdims=True))
    mx_ref[...] = jnp.maximum(
        mx_ref[...],
        jnp.max(jnp.where(valid, xf, -jnp.inf), axis=-1, keepdims=True))


def _apply_stats_kernel(x_ref, mn_ref, mx_ref, o_ref):
    xf = x_ref[...].astype(jnp.float32)
    mn = mn_ref[...]
    mx = mx_ref[...]
    inv = pl.reciprocal(mx - mn + _EPS, approx=False)
    o_ref[...] = ((xf - mn) * inv).astype(o_ref.dtype)


# ---------------------------------- wrapper -----------------------------------
def min_max_channel_normalize(x, *, max_block_bytes=None):
    """x: (N, C, H, W). Returns (x - min) / (max - min + 1e-6), min/max over (H, W)."""
    N, C, H, W = x.shape
    NC, HW = N * C, H * W
    itemsize = jnp.dtype(x.dtype).itemsize

    vmem_cap = _vmem_capacity_bytes()
    if max_block_bytes is None:
        # in + out, double-buffered -> ~4x block footprint; keep well under VMEM.
        max_block_bytes = vmem_cap // 10
    vmem_limit = min(vmem_cap, max(vmem_cap // 2, 32 * 1024 * 1024))

    def cparams(sem):
        return pltpu.CompilerParams(dimension_semantics=sem,
                                    vmem_limit_bytes=vmem_limit)

    xr = x.reshape(NC, HW)  # contiguous reshape: free
    row_bytes = HW * itemsize
    min_rows = NC if NC < 8 else 8

    if min_rows * row_bytes <= max_block_bytes:
        # ---- single pass: each grid step normalizes a slab of whole rows ----
        if NC < 8:
            rows = NC
        else:
            rows_fit = max_block_bytes // row_bytes
            rows = NC if rows_fit >= NC else max(8, (rows_fit // 8) * 8)
        grid = (pl.cdiv(NC, rows),)
        out_flat = pl.pallas_call(
            _minmax_rows_kernel,
            out_shape=jax.ShapeDtypeStruct((NC, HW), x.dtype),
            grid_spec=pltpu.PrefetchScalarGridSpec(
                num_scalar_prefetch=0,
                grid=grid,
                in_specs=[pl.BlockSpec((rows, HW), lambda i: (i, 0))],
                out_specs=pl.BlockSpec((rows, HW), lambda i: (i, 0)),
            ),
            compiler_params=cparams(("parallel",)),
        )(xr)
    else:
        # ---- fallback: pass 1 accumulates per-row min/max over column chunks,
        #      pass 2 applies the normalization. 3x HBM bytes but VMEM-safe. ----
        rows = min_rows
        cw_fit = max(1, max_block_bytes // (rows * itemsize))
        cw = max(128, (cw_fit // 128) * 128)
        cw = min(cw, ((HW + 127) // 128) * 128)
        grid = (pl.cdiv(NC, rows), pl.cdiv(HW, cw))

        stats_shape = jax.ShapeDtypeStruct((NC, 1), jnp.float32)
        mn, mx = pl.pallas_call(
            functools.partial(_row_stats_kernel, total_cols=HW),
            out_shape=(stats_shape, stats_shape),
            grid_spec=pltpu.PrefetchScalarGridSpec(
                num_scalar_prefetch=0,
                grid=grid,
                in_specs=[pl.BlockSpec((rows, cw), lambda i, j: (i, j))],
                out_specs=(pl.BlockSpec((rows, 1), lambda i, j: (i, 0)),
                           pl.BlockSpec((rows, 1), lambda i, j: (i, 0))),
            ),
            compiler_params=cparams(("parallel", "arbitrary")),
        )(xr)

        out_flat = pl.pallas_call(
            _apply_stats_kernel,
            out_shape=jax.ShapeDtypeStruct((NC, HW), x.dtype),
            grid_spec=pltpu.PrefetchScalarGridSpec(
                num_scalar_prefetch=0,
                grid=grid,
                in_specs=[pl.BlockSpec((rows, cw), lambda i, j: (i, j)),
                          pl.BlockSpec((rows, 1), lambda i, j: (i, 0)),
                          pl.BlockSpec((rows, 1), lambda i, j: (i, 0))],
                out_specs=pl.BlockSpec((rows, cw), lambda i, j: (i, j)),
            ),
            compiler_params=cparams(("parallel", "parallel")),
        )(xr, mn, mx)

    return out_flat.reshape(N, C, H, W)


def _reference(x):
    mn = jnp.min(x, axis=(2, 3), keepdims=True)
    mx = jnp.max(x, axis=(2, 3), keepdims=True)
    return (x - mn) / (mx - mn + 1e-6)


if __name__ == "__main__":
    # Primary (single-pass, lane-dense) path.
    x = jax.random.normal(jax.random.PRNGKey(0), (2, 4, 16, 16), dtype=jnp.float32)
    out = jax.block_until_ready(min_max_channel_normalize(x))
    ref = _reference(x)
    assert out.shape == x.shape and out.dtype == x.dtype
    assert jnp.allclose(out, ref, atol=2e-6, rtol=2e-6)

    # Two-pass fallback path (forced via a tiny block budget; exercises partial
    # row blocks and masked partial column chunks).
    x2 = jax.random.normal(jax.random.PRNGKey(0), (3, 4, 24, 40), dtype=jnp.float32)
    out2 = jax.block_until_ready(
        min_max_channel_normalize(x2, max_block_bytes=8 * 1024))
    ref2 = _reference(x2)
    assert out2.shape == x2.shape and out2.dtype == x2.dtype
    assert jnp.allclose(out2, ref2, atol=2e-6, rtol=2e-6)

    print("KERNEL_OK")
</pallas_src>

<mosaic_0001>
module attributes {stable_mosaic.version = 11 : i64} {
  func.func @_minmax_rows_kernel(%arg0: i32, %arg1: memref<8x256xf32, #tpu.memory_space<vmem>>, %arg2: memref<8x256xf32, #tpu.memory_space<vmem>>) attributes {dimension_semantics = [#tpu.dimension_semantics<parallel>], iteration_bounds = array<i64: 1>, scalar_prefetch = 0 : i64, scratch_operands = 0 : i64, tpu.core_type = #tpu.core_type<tc>, window_params = [{transform_indices = @transform_0, window_bounds = array<i64: 8, 256>}, {transform_indices = @transform_1, window_bounds = array<i64: 8, 256>}]} {
    %c0 = arith.constant 0 : index
    %c0_0 = arith.constant 0 : index
    %0 = vector.load %arg1[%c0, %c0_0] : memref<8x256xf32, #tpu.memory_space<vmem>>, vector<8x256xf32>
    %cst = arith.constant dense<0x7F800000> : vector<8xf32>
    %1 = vector.multi_reduction <minimumf>, %0, %cst [1] : vector<8x256xf32> to vector<8xf32>
    %2 = vector.shape_cast %1 : vector<8xf32> to vector<8x1xf32>
    %cst_1 = arith.constant dense<0xFF800000> : vector<8xf32>
    %3 = vector.multi_reduction <maximumf>, %0, %cst_1 [1] : vector<8x256xf32> to vector<8xf32>
    %4 = vector.shape_cast %3 : vector<8xf32> to vector<8x1xf32>
    %5 = arith.subf %4, %2 : vector<8x1xf32>
    %cst_2 = arith.constant 9.99999997E-7 : f32
    %6 = vector.broadcast %cst_2 : f32 to vector<8x1xf32>
    %7 = arith.addf %5, %6 : vector<8x1xf32>
    %8 = tpu.reciprocal %7 : vector<8x1xf32> -> vector<8x1xf32>
    %9 = vector.broadcast %2 : vector<8x1xf32> to vector<8x256xf32>
    %10 = arith.subf %0, %9 : vector<8x256xf32>
    %11 = vector.broadcast %8 : vector<8x1xf32> to vector<8x256xf32>
    %12 = arith.mulf %10, %11 : vector<8x256xf32>
    %c0_3 = arith.constant 0 : index
    %c0_4 = arith.constant 0 : index
    %13 = vector.load %arg2[%c0_3, %c0_4] : memref<8x256xf32, #tpu.memory_space<vmem>>, vector<8x256xf32>
    tpu.vector_store %arg2[%c0_3, %c0_4], %12 {strides = array<i32>} : memref<8x256xf32, #tpu.memory_space<vmem>>, vector<8x256xf32>,
    return
  }
  func.func @transform_0(%arg0: i32) -> (i32, i32) {
    %c0_i32 = arith.constant 0 : i32
    %c0_i32_0 = arith.constant 0 : i32
    return %arg0, %c0_i32 : i32, i32
  }
  func.func @transform_1(%arg0: i32) -> (i32, i32) {
    %c0_i32 = arith.constant 0 : i32
    %c0_i32_0 = arith.constant 0 : i32
    return %arg0, %c0_i32 : i32, i32
  }
}

</mosaic_0001>

<llo_original>
// kernel: tpu_custom_call.1
$region0: #{tpu_custom_call.1}
  #allocation0 [shape = 'u32[]', space=smem, size = 0x4, offset = 0x4, fixed_abs, tag = 'smem constant byte address 0x4 - core index']
  #allocation1 [shape = 'u32[144,128]{1,0:T(1,128)}', space=vmem, size = 0x12000, scoped, tag = 'internal scratch']
  %s0 = inlined_call_operand.hbm [shape: f32[8,256], index: 0, kind: input, shape index: {}]
  %s1 = inlined_call_operand.hbm [shape: f32[8,256], index: 1, kind: output, shape index: {}]
  %s2 = sld [smem:[#allocation0]]
  $region18: #{tpu_custom_call.1} parent=0
    _
  %s4 = ssub.s32 1, %s2
  %s5 = scalar_select 0, %s4, %s2
  $region1: #{tpu_custom_call.1} parent=0
    #allocation2 [shape = 'u8[8192]{0}', space=vmem, size = 0x2000, scoped, tag = 'input window, operand 0, single buffered']
    #allocation3 [shape = 's32[1]{0}', space=sflag, size = 0x4, scoped, tag = 'scoped memory for tpu_custom_call.1']
    #allocation4 [shape = 's32[1]{0}', space=sflag, size = 0x4, scoped, tag = 'scoped memory for tpu_custom_call.1']
    #allocation5 [shape = 'u8[8192]{0}', space=vmem, size = 0x2000, scoped, tag = 'output window, operand 0, single buffered']
    %6 = vsyncpa [#allocation3], 0
    %7 = vsyncpa [#allocation4], 0
    // Predicated region
    $region2: #{tpu_custom_call.1} parent=1 // pred_check
      _
    $region3: #{tpu_custom_call.1} parent=1 // pred_check_branch
      %9 = sbr.rel (0) target = $region5
    $region4: #{tpu_custom_call.1} parent=1 // pred_region
      %s11 = ssub.s32 256, 256
      %12 = vsyncadd [#allocation3], %s11
      %s14 = sshll.u32 [#allocation2], 4
      %s15 = int_to_ptr.vmem [resolvable:$true] %s14
      %17 = dma.hbm_to_vmem [thread:$0]  %s0, 256, %s15, [#allocation3]
    $region5: #{tpu_custom_call.1} parent=1 // pred_fallthru
      _
    // Predicated region
    $region6: #{tpu_custom_call.1} parent=1 // pred_check
      _
    $region7: #{tpu_custom_call.1} parent=1 // pred_check_branch
      %19 = sbr.rel (0) target = $region9
    $region8: #{tpu_custom_call.1} parent=1 // pred_region
      %20 = dma.done [#allocation3], 256
    $region9: #{tpu_custom_call.1} parent=1 // pred_fallthru
      _
    %v21 = vld [vmem:[#allocation2] sm:$0xff]
    %v22 = vld [vmem:[#allocation2 + $0x8] sm:$0xff]
    %v23 = vmin.f32 %v21, %v22
    %24 = vmin.xlane.f32.xlu0 %v23
    %v25 = vpop.xlane.xlu0 %24
    %v26 = vmax.f32 %v21, %v22
    %27 = vmax.xlane.f32.xlu0 %v26
    %v28 = vpop.xlane.xlu0 %27
    %v29 = vsub.f32 %v28, %v25
    %v30 = vadd.f32 %v29, 1e-06
    %v31 = vrcp.pop %v30
    %v32 = vsub.f32 %v21, %v25
    %v33 = vsub.f32 %v22, %v25
    %v34 = vmul.f32 %v32, %v31
    %v35 = vmul.f32 %v33, %v31
    %36 = vst [vmem:[#allocation5] sm:$0xff] %v34
    %37 = vst [vmem:[#allocation5 + $0x8] sm:$0xff] %v35
    // Predicated region
    $region10: #{tpu_custom_call.1} parent=1 // pred_check
      _
    $region11: #{tpu_custom_call.1} parent=1 // pred_check_branch
      %39 = sbr.rel (0) target = $region13
    $region12: #{tpu_custom_call.1} parent=1 // pred_region
      %s41 = ssub.s32 256, 256
      %42 = vsyncadd [#allocation4], %s41
      %s44 = sshll.u32 [#allocation5], 4
      %s45 = int_to_ptr.vmem [resolvable:$true] %s44
      %47 = dma.vmem_to_hbm [thread:$0]  %s45, 256, %s1, [#allocation4]
    $region13: #{tpu_custom_call.1} parent=1 // pred_fallthru
      _
    // Predicated region
    $region14: #{tpu_custom_call.1} parent=1 // pred_check
      _
    $region15: #{tpu_custom_call.1} parent=1 // pred_check_branch
      %49 = sbr.rel (0) target = $region17
    $region16: #{tpu_custom_call.1} parent=1 // pred_region
      %50 = dma.done [#allocation4], 256
    $region17: #{tpu_custom_call.1} parent=1 // pred_fallthru
      _
    %51 = vsyncpa [#allocation3], 1
    %52 = vsyncpa [#allocation4], 1

</llo_original>
